<compile_context>
chip_gen: v7x
topology: tpu7x:2x2x1
jax: 0.10.0
libtpu: 0.0.40
codegen_flags: <defaults>
</compile_context>

<pallas_src>
import functools

import jax
import jax.numpy as jnp
from jax.experimental import pallas as pl
from jax.experimental.pallas import tpu as pltpu

ALPHA = 2.0   # module default alpha=2
GAMMA = 5     # module default gamma=5 (Python int -> repeated multiplies)


def _device_profile():
    """Generation-aware VMEM budget / TensorCore count (conservative fallback)."""
    kind = ""
    try:
        kind = jax.devices()[0].device_kind.lower()
    except Exception:
        pass
    if "v7" in kind:
        # 2 TensorCores, but only 64 MiB VMEM per TC -> modest per-core footprint.
        return {"cores": 2, "budget": 20 << 20, "vmem_limit": 48 << 20}
    if "v6" in kind:
        # 1 TC, 128 MiB physical VMEM; raise the 32 MiB default scoped limit.
        return {"cores": 1, "budget": 40 << 20, "vmem_limit": 80 << 20}
    if "v5p" in kind or "v4" in kind:
        # Megacore chips: 2 TCs, plenty of VMEM.
        return {"cores": 2, "budget": 24 << 20, "vmem_limit": 56 << 20}
    # v5e / unknown: 1 TC, 16 MiB default scoped VMEM (raised a bit explicitly).
    return {"cores": 1, "budget": 12 << 20, "vmem_limit": 32 << 20}


def _choose_tile_rows(n, c, itemsize, vmem_budget_bytes, max_tile_rows=None):
    """Largest row-tile (multiple of 8) whose estimated VMEM footprint fits.

    Footprint model (per row):
      * double-buffered logits blocks in their native dtype (lane-padded C),
      * double-buffered (tn,1) int32 targets block (128-lane padded),
      * the (tn,1) f32 accumulator scratch,
      * ~3 live (tn,C) f32 temporaries (upcast / shifted / exp),
      * ~4 live (tn,1) f32 temporaries (max / lse / picked / nll).
    """
    c_pad = ((c + 127) // 128) * 128
    per_row = (
        2 * c_pad * itemsize     # logits blocks (double-buffered, native dtype)
        + 2 * 128 * 4            # targets blocks (double-buffered, lane-padded i32)
        + 128 * 4                # accumulator scratch
        + 3 * c_pad * 4          # wide f32 temporaries
        + 4 * 128 * 4            # narrow f32 temporaries
    )
    tn = vmem_budget_bytes // per_row
    if max_tile_rows is not None:
        tn = min(tn, max_tile_rows)
    tn = max(8, (tn // 8) * 8)
    n_ceil8 = ((n + 7) // 8) * 8
    return min(tn, max(8, n_ceil8))


def _partial_nll_kernel(targets_ref, logits_ref, out_ref, acc_ref, *,
                        n_total, tile_rows, tiles_per_part, need_mask):
    """Accumulate the per-part sum of per-row cross-entropy NLL into out_ref."""
    p = pl.program_id(0)          # partial-sum / core axis ("parallel")
    t = pl.program_id(1)          # tile axis within the part ("arbitrary")

    @pl.when(t == 0)
    def _init():
        acc_ref[...] = jnp.zeros_like(acc_ref)

    logits = logits_ref[...].astype(jnp.float32)            # (tn, C), upcast in VMEM
    tgt = targets_ref[...]                                   # (tn, 1) int32

    # Numerically stable cross-entropy without materializing full log-softmax:
    #   nll = logsumexp(shifted) - shifted[target]
    m = jnp.max(logits, axis=-1, keepdims=True)              # (tn, 1)
    shifted = logits - m                                      # (tn, C)
    lse = jnp.log(jnp.sum(jnp.exp(shifted), axis=-1, keepdims=True))   # (tn, 1)

    col = jax.lax.broadcasted_iota(jnp.int32, logits.shape, 1)          # (tn, C)
    picked = jnp.sum(jnp.where(col == tgt, shifted, 0.0),
                     axis=-1, keepdims=True)                            # (tn, 1)
    nll = lse - picked                                                  # (tn, 1)

    if need_mask:
        g = p * tiles_per_part + t      # global (unclamped) tile index

        @pl.when((g + 1) * tile_rows <= n_total)
        def _acc_interior():            # fully valid tile: no masking cost
            acc_ref[...] = acc_ref[...] + nll

        @pl.when((g + 1) * tile_rows > n_total)
        def _acc_edge():                # ragged / duplicated edge tile
            row = g * tile_rows + jax.lax.broadcasted_iota(
                jnp.int32, (tile_rows, 1), 0)
            acc_ref[...] = acc_ref[...] + jnp.where(row < n_total, nll, 0.0)
    else:
        acc_ref[...] = acc_ref[...] + nll

    @pl.when(t == tiles_per_part - 1)
    def _finalize():
        out_ref[...] = jnp.zeros_like(out_ref) + jnp.sum(acc_ref[...])


def focal_loss(logits, targets, *, alpha=ALPHA, gamma=GAMMA,
               max_tile_rows=None, force_num_parts=None):
    """logits: (N, C) float logits (f32 or bf16), targets: (N,) ints -> scalar f32."""
    N, C = logits.shape
    prof = _device_profile()
    itemsize = jnp.dtype(logits.dtype).itemsize
    tn = _choose_tile_rows(N, C, itemsize, prof["budget"], max_tile_rows=max_tile_rows)

    total_tiles = pl.cdiv(N, tn)
    if force_num_parts is not None:
        num_parts = force_num_parts
    else:
        num_parts = 2 if (prof["cores"] >= 2 and total_tiles >= 2) else 1
    num_parts = max(1, min(num_parts, total_tiles))
    tiles_per_part = pl.cdiv(total_tiles, num_parts)
    covered_rows = num_parts * tiles_per_part * tn
    need_mask = covered_rows != N      # any tile can contain rows >= N

    # Targets are tiny: cheap reshape/cast only.  The big logits array is passed
    # through untouched (no pad, no dtype cast).
    targets2d = targets.astype(jnp.int32).reshape(N, 1)

    last_tile = total_tiles - 1

    def tile_index(p, t):
        # Clamp so a duplicated trailing tile never issues a fully-OOB DMA; the
        # in-kernel mask (driven by the *unclamped* index) zeroes its contribution.
        g = p * tiles_per_part + t
        return (jnp.minimum(g, last_tile), 0)

    kernel = functools.partial(
        _partial_nll_kernel,
        n_total=N, tile_rows=tn, tiles_per_part=tiles_per_part,
        need_mask=need_mask,
    )

    partials = pl.pallas_call(
        kernel,
        out_shape=jax.ShapeDtypeStruct((num_parts, 1, 1), jnp.float32),
        grid=(num_parts, tiles_per_part),
        in_specs=[
            pl.BlockSpec((tn, 1), tile_index),   # targets (N, 1) int32
            pl.BlockSpec((tn, C), tile_index),   # logits (N, C) native dtype
        ],
        out_specs=pl.BlockSpec((1, 1, 1), lambda p, t: (p, 0, 0)),
        scratch_shapes=[pltpu.VMEM((tn, 1), jnp.float32)],
        compiler_params=pltpu.CompilerParams(
            dimension_semantics=("parallel", "arbitrary"),
            vmem_limit_bytes=prof["vmem_limit"],
        ),
    )(targets2d, logits)

    # Tiny scalar epilogue in plain JAX: combine partial sums + focal transform.
    bce = jnp.sum(partials) / jnp.float32(N)
    pt = jnp.exp(-bce)
    f_loss = alpha * (1.0 - pt) ** gamma * bce
    return f_loss.astype(jnp.float32)     # reduce=True: mean of a scalar is itself


def _focal_loss_ref(logits, targets, alpha=ALPHA, gamma=GAMMA):
    # pure-JAX reference mirroring the PyTorch semantics
    logp = jax.nn.log_softmax(logits.astype(jnp.float32), axis=-1)
    nll = -jnp.take_along_axis(logp, targets[:, None].astype(jnp.int32), axis=-1)[:, 0]
    bce = jnp.mean(nll)
    pt = jnp.exp(-bce)
    return alpha * (1.0 - pt) ** gamma * bce


if __name__ == "__main__":
    key = jax.random.PRNGKey(0)
    k1, k2, k3, k4, k5, k6 = jax.random.split(key, 6)

    # Test 1: small BERT-classification-style batch (batch=8, classes=32), f32.
    N, C = 8, 32
    logits = jax.random.normal(k1, (N, C), dtype=jnp.float32)
    targets = jax.random.randint(k2, (N,), 0, C, dtype=jnp.int32)
    out = jax.block_until_ready(focal_loss(logits, targets))
    ref = _focal_loss_ref(logits, targets)
    assert jnp.allclose(out, ref, rtol=1e-5, atol=1e-6), (out, ref)

    # Test 2: ragged batch + forced 2 partial sums + clamped duplicate edge tile
    # (N=35 rows, forced 8-row tiles -> 5 tiles -> 2 parts of 3 -> one ragged tile
    #  and one fully-masked clamped tile), logits streamed unpadded.
    N2, C2 = 35, 32
    logits2 = jax.random.normal(k3, (N2, C2), dtype=jnp.float32)
    targets2 = jax.random.randint(k4, (N2,), 0, C2, dtype=jnp.int32)
    out2 = jax.block_until_ready(
        focal_loss(logits2, targets2, max_tile_rows=8, force_num_parts=2))
    ref2 = _focal_loss_ref(logits2, targets2)
    assert jnp.allclose(out2, ref2, rtol=1e-5, atol=1e-6), (out2, ref2)

    # Test 3: bf16 logits streamed in their native dtype (upcast inside the kernel),
    # with a ragged last tile.
    N3, C3 = 40, 32
    logits3 = jax.random.normal(k5, (N3, C3), dtype=jnp.float32).astype(jnp.bfloat16)
    targets3 = jax.random.randint(k6, (N3,), 0, C3, dtype=jnp.int32)
    out3 = jax.block_until_ready(focal_loss(logits3, targets3, max_tile_rows=16))
    ref3 = _focal_loss_ref(logits3, targets3)
    assert jnp.allclose(out3, ref3, rtol=1e-4, atol=1e-5), (out3, ref3)

    print("KERNEL_OK")
</pallas_src>

<mosaic_0001>
module attributes {stable_mosaic.version = 11 : i64} {
  func.func @_partial_nll_kernel(%arg0: i32, %arg1: i32, %arg2: memref<8x1xi32, #tpu.memory_space<vmem>>, %arg3: memref<8x32xf32, #tpu.memory_space<vmem>>, %arg4: memref<1x1x1xf32, #tpu.memory_space<vmem>>, %arg5: memref<8x1xf32, #tpu.memory_space<vmem>>) attributes {dimension_semantics = [#tpu.dimension_semantics<parallel>, #tpu.dimension_semantics<arbitrary>], iteration_bounds = array<i64: 1, 1>, scalar_prefetch = 0 : i64, scratch_operands = 1 : i64, tpu.core_type = #tpu.core_type<tc>, window_params = [{transform_indices = @transform_0, window_bounds = array<i64: 8, 1>}, {transform_indices = @transform_1, window_bounds = array<i64: 8, 32>}, {transform_indices = @transform_2, window_bounds = array<i64: 1, 1, 1>}]} {
    %c0_i32 = arith.constant 0 : i32
    %0 = arith.cmpi eq, %arg1, %c0_i32 : i32
    %1 = arith.extui %0 : i1 to i32
    %c0_i32_0 = arith.constant 0 : i32
    %2 = arith.cmpi ne, %1, %c0_i32_0 : i32
    scf.if %2 {
      %cst_13 = arith.constant 0.000000e+00 : f32
      %27 = vector.broadcast %cst_13 : f32 to vector<8x1xf32>
      %c0_14 = arith.constant 0 : index
      %c0_15 = arith.constant 0 : index
      %28 = vector.load %arg5[%c0_14, %c0_15] : memref<8x1xf32, #tpu.memory_space<vmem>>, vector<8x1xf32>
      tpu.vector_store %arg5[%c0_14, %c0_15], %27 {strides = array<i32>} : memref<8x1xf32, #tpu.memory_space<vmem>>, vector<8x1xf32>,
    } else {
    }
    %c0 = arith.constant 0 : index
    %c0_1 = arith.constant 0 : index
    %3 = vector.load %arg3[%c0, %c0_1] : memref<8x32xf32, #tpu.memory_space<vmem>>, vector<8x32xf32>
    %c0_2 = arith.constant 0 : index
    %c0_3 = arith.constant 0 : index
    %4 = vector.load %arg2[%c0_2, %c0_3] : memref<8x1xi32, #tpu.memory_space<vmem>>, vector<8x1xi32>
    %cst = arith.constant dense<0xFF800000> : vector<8xf32>
    %5 = vector.multi_reduction <maximumf>, %3, %cst [1] : vector<8x32xf32> to vector<8xf32>
    %6 = vector.shape_cast %5 : vector<8xf32> to vector<8x1xf32>
    %7 = vector.broadcast %6 : vector<8x1xf32> to vector<8x32xf32>
    %8 = arith.subf %3, %7 : vector<8x32xf32>
    %9 = math.exp %8 : vector<8x32xf32>
    %cst_4 = arith.constant dense<0.000000e+00> : vector<8xf32>
    %10 = vector.multi_reduction <add>, %9, %cst_4 [1] : vector<8x32xf32> to vector<8xf32>
    %11 = vector.shape_cast %10 : vector<8xf32> to vector<8x1xf32>
    %12 = math.log %11 : vector<8x1xf32>
    %13 = tpu.iota {dimensions = array<i32: 1>} : vector<8x32xi32>
    %14 = vector.broadcast %4 : vector<8x1xi32> to vector<8x32xi32>
    %15 = arith.cmpi eq, %13, %14 : vector<8x32xi32>
    %cst_5 = arith.constant 0.000000e+00 : f32
    %16 = vector.broadcast %cst_5 : f32 to vector<8x32xf32>
    %17 = arith.select %15, %8, %16 : vector<8x32xi1>, vector<8x32xf32>
    %cst_6 = arith.constant dense<0.000000e+00> : vector<8xf32>
    %18 = vector.multi_reduction <add>, %17, %cst_6 [1] : vector<8x32xf32> to vector<8xf32>
    %19 = vector.shape_cast %18 : vector<8xf32> to vector<8x1xf32>
    %20 = arith.subf %12, %19 : vector<8x1xf32>
    %c0_7 = arith.constant 0 : index
    %c0_8 = arith.constant 0 : index
    %21 = vector.load %arg5[%c0_7, %c0_8] : memref<8x1xf32, #tpu.memory_space<vmem>>, vector<8x1xf32>
    %22 = arith.addf %21, %20 : vector<8x1xf32>
    %c0_9 = arith.constant 0 : index
    %c0_10 = arith.constant 0 : index
    %23 = vector.load %arg5[%c0_9, %c0_10] : memref<8x1xf32, #tpu.memory_space<vmem>>, vector<8x1xf32>
    tpu.vector_store %arg5[%c0_9, %c0_10], %22 {strides = array<i32>} : memref<8x1xf32, #tpu.memory_space<vmem>>, vector<8x1xf32>,
    %c0_i32_11 = arith.constant 0 : i32
    %24 = arith.cmpi eq, %arg1, %c0_i32_11 : i32
    %25 = arith.extui %24 : i1 to i32
    %c0_i32_12 = arith.constant 0 : i32
    %26 = arith.cmpi ne, %25, %c0_i32_12 : i32
    scf.if %26 {
      %cst_13 = arith.constant 0.000000e+00 : f32
      %27 = vector.broadcast %cst_13 : f32 to vector<1x1x1xf32>
      %c0_14 = arith.constant 0 : index
      %c0_15 = arith.constant 0 : index
      %28 = vector.load %arg5[%c0_14, %c0_15] : memref<8x1xf32, #tpu.memory_space<vmem>>, vector<8x1xf32>
      %29 = vector.shape_cast %28 : vector<8x1xf32> to vector<1x8x1xf32>
      %cst_16 = arith.constant dense<0.000000e+00> : vector<1xf32>
      %30 = vector.multi_reduction <add>, %29, %cst_16 [1, 2] : vector<1x8x1xf32> to vector<1xf32>
      %31 = vector.shape_cast %30 : vector<1xf32> to vector<1x1x1xf32>
      %32 = vector.extract %31[0, 0, 0] : f32 from vector<1x1x1xf32>
      %33 = vector.broadcast %32 : f32 to vector<1x1x1xf32>
      %34 = arith.addf %27, %33 : vector<1x1x1xf32>
      %c0_17 = arith.constant 0 : index
      %c0_18 = arith.constant 0 : index
      %c0_19 = arith.constant 0 : index
      %35 = vector.load %arg4[%c0_17, %c0_18, %c0_19] : memref<1x1x1xf32, #tpu.memory_space<vmem>>, vector<1x1x1xf32>
      tpu.vector_store %arg4[%c0_17, %c0_18, %c0_19], %34 {strides = array<i32>} : memref<1x1x1xf32, #tpu.memory_space<vmem>>, vector<1x1x1xf32>,
    } else {
    }
    return
  }
  func.func @transform_0(%arg0: i32, %arg1: i32) -> (i32, i32) {
    %c1_i32 = arith.constant 1 : i32
    %0 = arith.muli %arg0, %c1_i32 : i32
    %1 = arith.addi %0, %arg1 : i32
    %c0_i32 = arith.constant 0 : i32
    %2 = arith.minsi %1, %c0_i32 : i32
    %c0_i32_0 = arith.constant 0 : i32
    %c0_i32_1 = arith.constant 0 : i32
    return %2, %c0_i32_0 : i32, i32
  }
  func.func @transform_1(%arg0: i32, %arg1: i32) -> (i32, i32) {
    %c1_i32 = arith.constant 1 : i32
    %0 = arith.muli %arg0, %c1_i32 : i32
    %1 = arith.addi %0, %arg1 : i32
    %c0_i32 = arith.constant 0 : i32
    %2 = arith.minsi %1, %c0_i32 : i32
    %c0_i32_0 = arith.constant 0 : i32
    %c0_i32_1 = arith.constant 0 : i32
    return %2, %c0_i32_0 : i32, i32
  }
  func.func @transform_2(%arg0: i32, %arg1: i32) -> (i32, i32, i32) {
    %c0_i32 = arith.constant 0 : i32
    %c0_i32_0 = arith.constant 0 : i32
    %c0_i32_1 = arith.constant 0 : i32
    return %arg0, %c0_i32, %c0_i32_0 : i32, i32, i32
  }
}

</mosaic_0001>

<llo_original>
// kernel: tpu_custom_call.1
$region0: #{tpu_custom_call.1}
  #allocation0 [shape = 'u32[]', space=smem, size = 0x4, offset = 0x4, fixed_abs, tag = 'smem constant byte address 0x4 - core index']
  #allocation1 [shape = 'u32[144,128]{1,0:T(1,128)}', space=vmem, size = 0x12000, scoped, tag = 'internal scratch']
  #allocation2 [shape = 'f32[8,1]{1,0:T(8,128)}', space=vmem, size = 0x1000, scoped, tag = 'scratch operand']
  %s0 = inlined_call_operand.vmem [shape: s32[8,1], index: 0, kind: input, shape index: {}]
  %s1 = inlined_call_operand.vmem [shape: f32[8,32], index: 1, kind: input, shape index: {}]
  %s2 = inlined_call_operand.hbm [shape: f32[1,1,1], index: 2, kind: output, shape index: {}]
  %s3 = sld [smem:[#allocation0]]
  $region26: #{tpu_custom_call.1} parent=0
    _
  %s5 = ssub.s32 1, %s3
  %s6 = scalar_select 0, %s5, %s3
  $region1: #{tpu_custom_call.1} parent=0
    #allocation3 [shape = 'u8[512]{0}', space=vmem, size = 0x400, scoped, tag = 'output window, operand 0, single buffered']
    #allocation4 [shape = 's32[1]{0}', space=sflag, size = 0x4, scoped, tag = 'scoped memory for tpu_custom_call.1']
    %7 = vsyncpa [#allocation4], 0
    // Predicated region
    $region2: #{tpu_custom_call.1} parent=1 // pred_check
      _
    $region3: #{tpu_custom_call.1} parent=1 // pred_check_branch
      %9 = sbr.rel (0) target = $region5
    $region4: #{tpu_custom_call.1} parent=1 // pred_region
      %s10 = sadd.s32 0, 0
      %p11 = scmp.lt.s32.totalorder %s10, 0
      %s12 = scalar_select %p11, %s10, 0
      %p13 = scmp.lt.s32.totalorder %s12, 0
      %s14 = scalar_select %p13, %s12, 0
      %s15 = smul.addr %s14, 8
      %s16 = scalar_lea.vmem %s0, %s15
      %s17 = sadd.s32 0, 0
      %p18 = scmp.lt.s32.totalorder %s17, 0
      %s19 = scalar_select %p18, %s17, 0
    $region5: #{tpu_custom_call.1} parent=1 // pred_fallthru
      _
    // Predicated region
    $region6: #{tpu_custom_call.1} parent=1 // pred_check
      _
    $region7: #{tpu_custom_call.1} parent=1 // pred_check_branch
      %21 = sbr.rel (0) target = $region9
    $region8: #{tpu_custom_call.1} parent=1 // pred_region
      %s22 = sadd.s32 0, 0
      %p23 = scmp.lt.s32.totalorder %s22, 0
      %s24 = scalar_select %p23, %s22, 0
      %p25 = scmp.lt.s32.totalorder %s24, 0
      %s26 = scalar_select %p25, %s24, 0
      %s27 = smul.addr %s26, 8
      %s28 = scalar_lea.vmem %s1, %s27
      %s29 = sadd.s32 0, 0
      %p30 = scmp.lt.s32.totalorder %s29, 0
      %s31 = scalar_select %p30, %s29, 0
    $region9: #{tpu_custom_call.1} parent=1 // pred_fallthru
      _
    %s32 = sadd.s32 0, 0
    %p33 = scmp.lt.s32.totalorder %s32, 0
    %s34 = scalar_select %p33, %s32, 0
    %p35 = scmp.lt.s32.totalorder %s34, 0
    %s36 = scalar_select %p35, %s34, 0
    %s37 = smul.addr %s36, 8
    %s38 = scalar_lea.vmem %s0, %s37
    %s39 = sadd.s32 0, 0
    %p40 = scmp.lt.s32.totalorder %s39, 0
    %s41 = scalar_select %p40, %s39, 0
    %p42 = scmp.lt.s32.totalorder %s41, 0
    %s43 = scalar_select %p42, %s41, 0
    %s44 = smul.addr %s43, 8
    %s45 = scalar_lea.vmem %s1, %s44
    %s46 = sadd.s32 0, 0
    %p47 = scmp.lt.s32.totalorder %s46, 0
    %s48 = scalar_select %p47, %s46, 0
    %p49 = scmp.lt.s32.totalorder %s48, 0
    %s50 = scalar_select %p49, %s48, 0
    %s51 = smul.addr %s50, 8
    %s52 = scalar_lea.vmem %s0, %s51
    %s53 = sadd.s32 0, 0
    %p54 = scmp.lt.s32.totalorder %s53, 0
    %s55 = scalar_select %p54, %s53, 0
    %s56 = sadd.s32 0, 0
    %p57 = scmp.lt.s32.totalorder %s56, 0
    %s58 = scalar_select %p57, %s56, 0
    %p59 = scmp.lt.s32.totalorder %s58, 0
    %s60 = scalar_select %p59, %s58, 0
    %s61 = smul.addr %s60, 8
    %s62 = scalar_lea.vmem %s1, %s61
    %s63 = sadd.s32 0, 0
    %p64 = scmp.lt.s32.totalorder %s63, 0
    %s65 = scalar_select %p64, %s63, 0
    %p66 = scmp.eq.s32.totalorder 0, 0
    // Predicated region
    $region10: #{tpu_custom_call.1} parent=1 // pred_check
      %p67 = pneg %p66
    $region11: #{tpu_custom_call.1} parent=1 // pred_check_branch
      %69 = sbr.rel (%p67) target = $region13
    $region12: #{tpu_custom_call.1} parent=1 // pred_region
      %vm70 = vcmask 7168
      %71 = vst.msk [vmem:[#allocation2] sm:$0xff] %vm70, 0.0
    $region13: #{tpu_custom_call.1} parent=1 // pred_fallthru
      _
    %v72 = vld [vmem:[%s62] sm:$0xff]
    %v73 = vld [vmem:[%s52] sm:$0xff]
    %vm74 = vcmask 261120
    %v75 = vsel %vm74, %v72, -inf
    %76 = vmax.xlane.f32.xlu0 %v75
    %v77 = vpop.xlane.xlu0 %76
    %v78 = vsub.f32 %v72, %v77
    %v79 = vmul.f32 %v78, 1.442695
    %v80 = vpow.pop %v79
    %v81 = vsel %vm74, %v80, 0.0
    %82 = vadd.xlane.f32.xlu0 %v81
    %v83 = vpop.xlane.xlu0 %82
    %v84 = vlog2.pop %v83
    %v85 = vmul.f32 %v84, 0.6931472
    %v86 = vlaneseq
    %v87 = vand.u32 %v86, 127
    %88 = vset.pattern.permute.xlu0 0
    %89 = vperm.xlu0 %88, %v73
    %v90 = vpop.permute.xlu0 %89
    %vm91 = vcmp.eq.s32.totalorder %v87, %v90
    %v92 = vsel %vm91, %v78, 0.0
    %v93 = vsel %vm74, %v92, 0.0
    %94 = vadd.xlane.f32.xlu0 %v93
    %v95 = vpop.xlane.xlu0 %94
    %v96 = vsub.f32 %v85, %v95
    %v97 = vld [vmem:[#allocation2] sm:$0xff]
    %v98 = vadd.f32 %v97, %v96
    %vm99 = vcmask 7168
    %100 = vst.msk [vmem:[#allocation2] sm:$0xff] %vm99, %v98
    // Predicated region
    $region14: #{tpu_custom_call.1} parent=1 // pred_check
      %p101 = pneg %p66
    $region15: #{tpu_custom_call.1} parent=1 // pred_check_branch
      %103 = sbr.rel (%p101) target = $region17
    $region16: #{tpu_custom_call.1} parent=1 // pred_region
      %v104 = vld [vmem:[#allocation2] sm:$0xff]
      %v105 = vsel %vm99, %v104, 0.0
      %106 = vadd.xlane.f32.xlu0 %v105
      %v107 = vpop.xlane.xlu0 %106
      %v108 = vrot.slane %v107, 4
      %v109 = vadd.f32 %v107, %v108
      %v110 = vrot.slane %v109, 2
      %v111 = vadd.f32 %v109, %v110
      %v112 = vrot.slane %v111, 1
      %v113 = vadd.f32 %v111, %v112
      %s114 = vtos %v113
      %v115 = vstv %s114
      %v116 = vadd.f32 %v115, 0.0
      %vm117 = vcmask 0
      %118 = vst.msk [vmem:[#allocation3] sm:$0x1] %vm117, %v116
    $region17: #{tpu_custom_call.1} parent=1 // pred_fallthru
      _
    // Predicated region
    $region18: #{tpu_custom_call.1} parent=1 // pred_check
      _
    $region19: #{tpu_custom_call.1} parent=1 // pred_check_branch
      %120 = sbr.rel (0) target = $region21
    $region20: #{tpu_custom_call.1} parent=1 // pred_region
      %s122 = ssub.s32 16, 16
      %123 = vsyncadd [#allocation4], %s122
      %s125 = sshll.u32 [#allocation3], 4
      %s126 = int_to_ptr.vmem [resolvable:$true] %s125
      %128 = dma.vmem_to_hbm [thread:$0]  %s126, 16, %s2, [#allocation4]
    $region21: #{tpu_custom_call.1} parent=1 // pred_fallthru
      _
    // Predicated region
    $region22: #{tpu_custom_call.1} parent=1 // pred_check
      _
    $region23: #{tpu_custom_call.1} parent=1 // pred_check_branch
      %130 = sbr.rel (0) target = $region25
    $region24: #{tpu_custom_call.1} parent=1 // pred_region
      %131 = dma.done [#allocation4], 16
    $region25: #{tpu_custom_call.1} parent=1 // pred_fallthru
      _
    %132 = vsyncpa [#allocation4], 1

</llo_original>
